<compile_context>
chip_gen: v6e
topology: v6e:2x2x1
jax: 0.10.0
libtpu: 0.0.40
codegen_flags: <defaults>
</compile_context>

<pallas_src>
import functools
import numpy as np
import jax
import jax.numpy as jnp
from jax.experimental import pallas as pl
from jax.experimental.pallas import tpu as pltpu

_VMEM_LIMIT_BYTES = 32 * 1024 * 1024


def _round_up(a: int, m: int) -> int:
    return (a + m - 1) // m * m


def _ez_tile(x, w_ref, c_ref):
    """exp(-z) for one batch tile; all O(tb*S*D) work on the MXU.

    z = [x*x, x] @ W (+ c) with W = [spacing^T ; -(2*state*spacing)^T] and,
    when folded, c baked into W through a 1.0 lane in x.
    """
    x_aug = jnp.concatenate([x * x, x], axis=-1)          # (tb, 2*Dk)
    z = jnp.dot(x_aug, w_ref[...], preferred_element_type=jnp.float32)
    if c_ref is not None:                                 # un-folded path only
        z = z + c_ref[...]
    # Matches the PyTorch reference: exp(-z) is deliberately unshifted.
    return jnp.exp(-z)


def _colsum_kernel(x_ref, w_ref, *rest, batch, block_b, fold_c, ragged):
    """Pass 1: per-tile partial batch-sums of ez (ez itself never hits HBM)."""
    if fold_c:
        (colsum_ref,) = rest
        c_ref = None
    else:
        c_ref, colsum_ref = rest

    ez = _ez_tile(x_ref[...], w_ref, c_ref)               # (tb, S_pad)

    if ragged:  # zero out rows past the real batch so they don't pollute colsum
        i = pl.program_id(0)
        row = jax.lax.broadcasted_iota(jnp.int32, ez.shape, 0) + i * block_b
        ez = jnp.where(row < batch, ez, 0.0)

    psum = jnp.sum(ez, axis=0, keepdims=True)             # (1, S_pad)
    # (1, 8, S_pad) block: sublane-broadcast keeps the block shape (8,128)-clean.
    colsum_ref[...] = jnp.broadcast_to(psum, (8, psum.shape[-1]))[None, :, :]


def _expect_kernel(x_ref, w_ref, *rest, fold_c):
    """Pass 2: out = exp(-z) @ (vals^T * 1/colsum) — recomputed ez, pure MXU."""
    if fold_c:
        vals_ref, out_ref = rest
        c_ref = None
    else:
        c_ref, vals_ref, out_ref = rest
    ez = _ez_tile(x_ref[...], w_ref, c_ref)
    out_ref[...] = jnp.dot(ez, vals_ref[...],
                           preferred_element_type=jnp.float32).astype(out_ref.dtype)


@functools.partial(jax.jit, static_argnames=("batch_tile",))
def partition_expectation(x, state, state_spacing, state_vals, *, batch_tile=512):
    """x: (B, size_in) -> (B, size_out), matching PartitionExpectation.forward."""
    B, D = x.shape
    S = state.shape[0]
    O = state_vals.shape[0]
    f32 = jnp.float32

    S_pad = _round_up(S, 128)
    O_pad = _round_up(O, 128)

    # Batch tiling: 512 default, never larger than needed, always a multiple of 8.
    tb = min(_round_up(batch_tile, 8), _round_up(B, 8))
    nB = pl.cdiv(B, tb)
    ragged = (B % tb) != 0

    state = state.astype(f32)
    state_spacing = state_spacing.astype(f32)
    c_vec = jnp.sum(state * state * state_spacing, axis=-1)        # (S,)

    fold_c = (D % 128) != 0
    if fold_c:
        # Lane padding is required anyway for a dense MXU contraction; use the
        # first spare lane (column D) as a 1.0 column so c folds into W.
        Dk = _round_up(D, 128)
        xk = (jnp.zeros((B, Dk), f32)
              .at[:, :D].set(x.astype(f32))
              .at[:, D].set(1.0))
        w_stk = (jnp.zeros((2 * Dk, S_pad), f32)
                 .at[:D, :S].set(state_spacing.T)
                 .at[Dk:Dk + D, :S].set(-(2.0 * state * state_spacing).T)
                 .at[Dk + D, :S].set(c_vec))
        c_arr = None
    else:
        # size_in already lane-aligned: no padded copy of x; pass c explicitly.
        Dk = D
        xk = x.astype(f32)
        w_stk = (jnp.zeros((2 * Dk, S_pad), f32)
                 .at[:D, :S].set(state_spacing.T)
                 .at[D:, :S].set(-(2.0 * state * state_spacing).T))
        c_arr = jnp.zeros((1, S_pad), f32).at[0, :S].set(c_vec)

    x_spec = pl.BlockSpec((tb, Dk), lambda i: (i, 0))
    w_spec = pl.BlockSpec((2 * Dk, S_pad), lambda i: (0, 0))
    c_spec = pl.BlockSpec((1, S_pad), lambda i: (0, 0))
    cparams = pltpu.CompilerParams(dimension_semantics=("parallel",),
                                   vmem_limit_bytes=_VMEM_LIMIT_BYTES)

    in_specs1 = [x_spec, w_spec] + ([] if fold_c else [c_spec])
    args1 = (xk, w_stk) if fold_c else (xk, w_stk, c_arr)

    # ---- pass 1: per-tile partial column sums (fully parallel over batch) ----
    partial_cs = pl.pallas_call(
        functools.partial(_colsum_kernel, batch=B, block_b=tb,
                          fold_c=fold_c, ragged=ragged),
        out_shape=jax.ShapeDtypeStruct((nB, 8, S_pad), f32),
        grid=(nB,),
        in_specs=in_specs1,
        out_specs=pl.BlockSpec((1, 8, S_pad), lambda i: (i, 0, 0)),
        compiler_params=cparams,
    )(*args1)

    # Tiny XLA epilogue: reduce partials and hoist 1/colsum onto the weight side
    # so pass 2 is a bare ez @ vals_scaled (no per-tile reciprocal / divide).
    colsum = jnp.sum(partial_cs[:, 0, :], axis=0)                  # (S_pad,)
    vals_scaled = (jnp.zeros((S_pad, O_pad), f32)
                   .at[:S, :O].set(state_vals.astype(f32).T)) / colsum[:, None]

    in_specs2 = [x_spec, w_spec] + ([] if fold_c else [c_spec]) + [
        pl.BlockSpec((S_pad, O_pad), lambda i: (0, 0))]
    args2 = args1 + (vals_scaled,)

    # ---- pass 2: out = ez @ (vals^T / colsum), recompute ez on the fly ----
    out = pl.pallas_call(
        functools.partial(_expect_kernel, fold_c=fold_c),
        out_shape=jax.ShapeDtypeStruct((B, O_pad), f32),
        grid=(nB,),
        in_specs=in_specs2,
        out_specs=pl.BlockSpec((tb, O_pad), lambda i: (i, 0)),
        compiler_params=cparams,
    )(*args2)

    return out[:, :O]


def partition_expectation_ref(x, state, state_spacing, state_vals):
    """Pure-JAX reference mirroring the PyTorch forward exactly."""
    z = jnp.sum((x[:, None, :] - state[None, :, :]) ** 2 * state_spacing[None, :, :],
                axis=-1)
    ez = jnp.exp(-z)
    norm = ez / ez.sum(0)
    return jnp.dot(norm, state_vals.T, precision=jax.lax.Precision.HIGHEST)


if __name__ == "__main__":
    def run_case(seed, batch, size_in, num_states, size_out, *,
                 x_scale=1.0, batch_tile=512):
        key = jax.random.PRNGKey(seed)
        k_x, k_state, k_spacing, k_vals = jax.random.split(key, 4)
        # Parameter init matching the PyTorch __init__ distributions:
        #   kaiming_uniform_(state, a=sqrt(5)) -> U(-1/sqrt(fan_in), 1/sqrt(fan_in))
        bound = 1.0 / np.sqrt(size_in)
        state = jax.random.uniform(k_state, (num_states, size_in), jnp.float32,
                                   minval=-bound, maxval=bound)
        state_spacing = jax.random.uniform(k_spacing, (num_states, size_in),
                                           jnp.float32, minval=0.0, maxval=1.0)
        state_vals = jax.random.uniform(k_vals, (size_out, num_states),
                                        jnp.float32, minval=0.0, maxval=1.0)
        x = x_scale * jax.random.normal(k_x, (batch, size_in), jnp.float32)

        out = partition_expectation(x, state, state_spacing, state_vals,
                                    batch_tile=batch_tile)
        out = jax.block_until_ready(out)
        ref = partition_expectation_ref(x, state, state_spacing, state_vals)
        np.testing.assert_allclose(np.asarray(out), np.asarray(ref),
                                   rtol=2e-3, atol=2e-5)

    # Folded-constant path, single full tile.
    run_case(seed=0, batch=8, size_in=16, num_states=8, size_out=4)
    # Folded path, multi-tile grid with a ragged last tile (10 = 8 + 2).
    run_case(seed=1, batch=10, size_in=20, num_states=6, size_out=3, batch_tile=8)
    # Lane-aligned size_in: no padded x copy, explicit-c input, ragged tile.
    run_case(seed=2, batch=12, size_in=128, num_states=16, size_out=5, x_scale=0.5)

    print("KERNEL_OK")
</pallas_src>

<mosaic_0001>
module attributes {stable_mosaic.version = 11 : i64} {
  func.func @_colsum_kernel(%arg0: i32, %arg1: memref<8x128xf32, #tpu.memory_space<vmem>>, %arg2: memref<256x128xf32, #tpu.memory_space<vmem>>, %arg3: memref<1x8x128xf32, #tpu.memory_space<vmem>>) attributes {dimension_semantics = [#tpu.dimension_semantics<parallel>], iteration_bounds = array<i64: 1>, scalar_prefetch = 0 : i64, scratch_operands = 0 : i64, tpu.core_type = #tpu.core_type<tc>, window_params = [{transform_indices = @transform_0, window_bounds = array<i64: 8, 128>}, {pipeline_mode = #tpu.pipeline_mode<synchronous>, transform_indices = @transform_1, window_bounds = array<i64: 256, 128>}, {transform_indices = @transform_2, window_bounds = array<i64: 1, 8, 128>}]} {
    %c0 = arith.constant 0 : index
    %c0_0 = arith.constant 0 : index
    %0 = vector.load %arg1[%c0, %c0_0] : memref<8x128xf32, #tpu.memory_space<vmem>>, vector<8x128xf32>
    %1 = arith.mulf %0, %0 : vector<8x128xf32>
    %2 = tpu.concatenate %1, %0 in 1 : vector<8x128xf32>, vector<8x128xf32> -> vector<8x256xf32>
    %c0_1 = arith.constant 0 : index
    %c0_2 = arith.constant 0 : index
    %3 = vector.load %arg2[%c0_1, %c0_2] : memref<256x128xf32, #tpu.memory_space<vmem>>, vector<256x128xf32>
    %cst = arith.constant dense<0.000000e+00> : vector<8x128xf32>
    %4 = tpu.matmul %2, %3, %cst {dimension_numbers = #tpu.dot_dimension_numbers<[1], [0], [0], [1], [0, 0, 1, 1], [], []>} : vector<8x256xf32>, vector<256x128xf32>, vector<8x128xf32> -> vector<8x128xf32>
    %cst_3 = arith.constant 0.000000e+00 : f32
    %5 = vector.broadcast %cst_3 : f32 to vector<8x128xf32>
    %6 = arith.subf %5, %4 : vector<8x128xf32>
    %7 = math.exp %6 : vector<8x128xf32>
    %cst_4 = arith.constant dense<0.000000e+00> : vector<128xf32>
    %8 = vector.multi_reduction <add>, %7, %cst_4 [0] : vector<8x128xf32> to vector<128xf32>
    %9 = vector.shape_cast %8 : vector<128xf32> to vector<1x128xf32>
    %10 = vector.shape_cast %9 : vector<1x128xf32> to vector<1x128xf32>
    %11 = vector.broadcast %10 : vector<1x128xf32> to vector<8x128xf32>
    %12 = vector.shape_cast %11 : vector<8x128xf32> to vector<1x8x128xf32>
    %c0_5 = arith.constant 0 : index
    %c0_6 = arith.constant 0 : index
    %c0_7 = arith.constant 0 : index
    %13 = vector.load %arg3[%c0_5, %c0_6, %c0_7] : memref<1x8x128xf32, #tpu.memory_space<vmem>>, vector<1x8x128xf32>
    tpu.vector_store %arg3[%c0_5, %c0_6, %c0_7], %12 {strides = array<i32>} : memref<1x8x128xf32, #tpu.memory_space<vmem>>, vector<1x8x128xf32>,
    return
  }
  func.func @transform_0(%arg0: i32) -> (i32, i32) {
    %c0_i32 = arith.constant 0 : i32
    %c0_i32_0 = arith.constant 0 : i32
    return %arg0, %c0_i32 : i32, i32
  }
  func.func @transform_1(%arg0: i32) -> (i32, i32) {
    %c0_i32 = arith.constant 0 : i32
    %c0_i32_0 = arith.constant 0 : i32
    %c0_i32_1 = arith.constant 0 : i32
    return %c0_i32, %c0_i32_0 : i32, i32
  }
  func.func @transform_2(%arg0: i32) -> (i32, i32, i32) {
    %c0_i32 = arith.constant 0 : i32
    %c0_i32_0 = arith.constant 0 : i32
    %c0_i32_1 = arith.constant 0 : i32
    return %arg0, %c0_i32, %c0_i32_0 : i32, i32, i32
  }
}

module attributes {stable_mosaic.version = 11 : i64} {
  func.func @_expect_kernel(%arg0: i32, %arg1: memref<8x128xf32, #tpu.memory_space<vmem>>, %arg2: memref<256x128xf32, #tpu.memory_space<vmem>>, %arg3: memref<128x128xf32, #tpu.memory_space<vmem>>, %arg4: memref<8x128xf32, #tpu.memory_space<vmem>>) attributes {dimension_semantics = [#tpu.dimension_semantics<parallel>], iteration_bounds = array<i64: 1>, scalar_prefetch = 0 : i64, scratch_operands = 0 : i64, tpu.core_type = #tpu.core_type<tc>, window_params = [{transform_indices = @transform_0, window_bounds = array<i64: 8, 128>}, {pipeline_mode = #tpu.pipeline_mode<synchronous>, transform_indices = @transform_1, window_bounds = array<i64: 256, 128>}, {pipeline_mode = #tpu.pipeline_mode<synchronous>, transform_indices = @transform_2, window_bounds = array<i64: 128, 128>}, {transform_indices = @transform_3, window_bounds = array<i64: 8, 128>}]} {
    %c0 = arith.constant 0 : index
    %c0_0 = arith.constant 0 : index
    %0 = vector.load %arg1[%c0, %c0_0] : memref<8x128xf32, #tpu.memory_space<vmem>>, vector<8x128xf32>
    %1 = arith.mulf %0, %0 : vector<8x128xf32>
    %2 = tpu.concatenate %1, %0 in 1 : vector<8x128xf32>, vector<8x128xf32> -> vector<8x256xf32>
    %c0_1 = arith.constant 0 : index
    %c0_2 = arith.constant 0 : index
    %3 = vector.load %arg2[%c0_1, %c0_2] : memref<256x128xf32, #tpu.memory_space<vmem>>, vector<256x128xf32>
    %cst = arith.constant dense<0.000000e+00> : vector<8x128xf32>
    %4 = tpu.matmul %2, %3, %cst {dimension_numbers = #tpu.dot_dimension_numbers<[1], [0], [0], [1], [0, 0, 1, 1], [], []>} : vector<8x256xf32>, vector<256x128xf32>, vector<8x128xf32> -> vector<8x128xf32>
    %cst_3 = arith.constant 0.000000e+00 : f32
    %5 = vector.broadcast %cst_3 : f32 to vector<8x128xf32>
    %6 = arith.subf %5, %4 : vector<8x128xf32>
    %7 = math.exp %6 : vector<8x128xf32>
    %c0_4 = arith.constant 0 : index
    %c0_5 = arith.constant 0 : index
    %8 = vector.load %arg3[%c0_4, %c0_5] : memref<128x128xf32, #tpu.memory_space<vmem>>, vector<128x128xf32>
    %cst_6 = arith.constant dense<0.000000e+00> : vector<8x128xf32>
    %9 = tpu.matmul %7, %8, %cst_6 {dimension_numbers = #tpu.dot_dimension_numbers<[1], [0], [0], [1], [0, 0, 1, 1], [], []>} : vector<8x128xf32>, vector<128x128xf32>, vector<8x128xf32> -> vector<8x128xf32>
    %c0_7 = arith.constant 0 : index
    %c0_8 = arith.constant 0 : index
    %10 = vector.load %arg4[%c0_7, %c0_8] : memref<8x128xf32, #tpu.memory_space<vmem>>, vector<8x128xf32>
    tpu.vector_store %arg4[%c0_7, %c0_8], %9 {strides = array<i32>} : memref<8x128xf32, #tpu.memory_space<vmem>>, vector<8x128xf32>,
    return
  }
  func.func @transform_0(%arg0: i32) -> (i32, i32) {
    %c0_i32 = arith.constant 0 : i32
    %c0_i32_0 = arith.constant 0 : i32
    return %arg0, %c0_i32 : i32, i32
  }
  func.func @transform_1(%arg0: i32) -> (i32, i32) {
    %c0_i32 = arith.constant 0 : i32
    %c0_i32_0 = arith.constant 0 : i32
    %c0_i32_1 = arith.constant 0 : i32
    return %c0_i32, %c0_i32_0 : i32, i32
  }
  func.func @transform_2(%arg0: i32) -> (i32, i32) {
    %c0_i32 = arith.constant 0 : i32
    %c0_i32_0 = arith.constant 0 : i32
    %c0_i32_1 = arith.constant 0 : i32
    return %c0_i32, %c0_i32_0 : i32, i32
  }
  func.func @transform_3(%arg0: i32) -> (i32, i32) {
    %c0_i32 = arith.constant 0 : i32
    %c0_i32_0 = arith.constant 0 : i32
    return %arg0, %c0_i32 : i32, i32
  }
}

</mosaic_0001>

<llo_original>
// kernel: partition_expectation.3
$region0: #{partition_expectation.3}
  #allocation0 [shape = 'u32[]', space=smem, size = 0x4, offset = 0x4, fixed_abs, tag = 'smem constant byte address 0x4 - core index']
  #allocation1 [shape = 'u32[144,128]{1,0:T(1,128)}', space=vmem, size = 0x12000, scoped, tag = 'internal scratch']
  %s0 = inlined_call_operand.vmem [shape: f32[8,128], index: 0, kind: input, shape index: {}]
  %s1 = inlined_call_operand.vmem [shape: f32[256,128], index: 1, kind: input, shape index: {}]
  %s2 = inlined_call_operand.vmem [shape: f32[128,128], index: 2, kind: input, shape index: {}]
  %s3 = inlined_call_operand.vmem [shape: f32[8,128], index: 3, kind: output, shape index: {}]
  %s4 = sld [smem:[#allocation0]]
  $region22: #{partition_expectation.3} parent=0
    _
  %s6 = ssub.s32 1, %s4
  %s7 = scalar_select 0, %s6, %s4
  // Predicated region
  $region2: #{partition_expectation.3} parent=0 // pred_check
    _
  $region3: #{partition_expectation.3} parent=0 // pred_check_branch
    %9 = sbr.rel (0) target = $region5
  $region4: #{partition_expectation.3} parent=0 // pred_region
    _
  $region5: #{partition_expectation.3} parent=0 // pred_fallthru
    _
  // Predicated region
  $region6: #{partition_expectation.3} parent=0 // pred_check
    _
  $region7: #{partition_expectation.3} parent=0 // pred_check_branch
    %11 = sbr.rel (0) target = $region9
  $region8: #{partition_expectation.3} parent=0 // pred_region
    _
  $region9: #{partition_expectation.3} parent=0 // pred_fallthru
    _
  // Predicated region
  $region10: #{partition_expectation.3} parent=0 // pred_check
    _
  $region11: #{partition_expectation.3} parent=0 // pred_check_branch
    %13 = sbr.rel (0) target = $region13
  $region12: #{partition_expectation.3} parent=0 // pred_region
    _
  $region13: #{partition_expectation.3} parent=0 // pred_fallthru
    _
  %v14 = vld [vmem:[%s0] sm:$0xff]
  %v15 = vmul.f32 %v14, %v14
  %v16 = vld [vmem:[%s1] sm:$0xff]
  %v17 = vld [vmem:[%s1 + $0x8] sm:$0xff]
  %v18 = vld [vmem:[%s1 + $0x10] sm:$0xff]
  %v19 = vld [vmem:[%s1 + $0x18] sm:$0xff]
  %v20 = vld [vmem:[%s1 + $0x20] sm:$0xff]
  %v21 = vld [vmem:[%s1 + $0x28] sm:$0xff]
  %v22 = vld [vmem:[%s1 + $0x30] sm:$0xff]
  %v23 = vld [vmem:[%s1 + $0x38] sm:$0xff]
  %v24 = vld [vmem:[%s1 + $0x40] sm:$0xff]
  %v25 = vld [vmem:[%s1 + $0x48] sm:$0xff]
  %v26 = vld [vmem:[%s1 + $0x50] sm:$0xff]
  %v27 = vld [vmem:[%s1 + $0x58] sm:$0xff]
  %v28 = vld [vmem:[%s1 + $0x60] sm:$0xff]
  %v29 = vld [vmem:[%s1 + $0x68] sm:$0xff]
  %v30 = vld [vmem:[%s1 + $0x70] sm:$0xff]
  %v31 = vld [vmem:[%s1 + $0x78] sm:$0xff]
  %v32 = vld [vmem:[%s1 + $0x80] sm:$0xff]
  %v33 = vld [vmem:[%s1 + $0x88] sm:$0xff]
  %v34 = vld [vmem:[%s1 + $0x90] sm:$0xff]
  %v35 = vld [vmem:[%s1 + $0x98] sm:$0xff]
  %v36 = vld [vmem:[%s1 + $0xa0] sm:$0xff]
  %v37 = vld [vmem:[%s1 + $0xa8] sm:$0xff]
  %v38 = vld [vmem:[%s1 + $0xb0] sm:$0xff]
  %v39 = vld [vmem:[%s1 + $0xb8] sm:$0xff]
  %v40 = vld [vmem:[%s1 + $0xc0] sm:$0xff]
  %v41 = vld [vmem:[%s1 + $0xc8] sm:$0xff]
  %v42 = vld [vmem:[%s1 + $0xd0] sm:$0xff]
  %v43 = vld [vmem:[%s1 + $0xd8] sm:$0xff]
  %v44 = vld [vmem:[%s1 + $0xe0] sm:$0xff]
  %v45 = vld [vmem:[%s1 + $0xe8] sm:$0xff]
  %v46 = vld [vmem:[%s1 + $0xf0] sm:$0xff]
  %v47 = vld [vmem:[%s1 + $0xf8] sm:$0xff]
  %48 = vmatprep.subr.mxu0 0.0
  %49 = vmatpush1.msra.mxu0 %v31
  %50 = vmatprep.subr.mxu0 0.0
  %51 = vmatpush1.msra.mxu0 %v30
  %52 = vmatprep.subr.mxu0 0.0
  %53 = vmatpush1.msra.mxu0 %v29
  %54 = vmatprep.subr.mxu0 0.0
  %55 = vmatpush1.msra.mxu0 %v28
  %56 = vmatprep.subr.mxu0 0.0
  %57 = vmatpush1.msra.mxu0 %v27
  %58 = vmatprep.subr.mxu0 0.0
  %59 = vmatpush1.msra.mxu0 %v26
  %60 = vmatprep.subr.mxu0 0.0
  %61 = vmatpush1.msra.mxu0 %v25
  %62 = vmatprep.subr.mxu0 0.0
  %63 = vmatpush1.msra.mxu0 %v24
  %64 = vmatprep.subr.mxu0 0.0
  %65 = vmatpush1.msra.mxu0 %v23
  %66 = vmatprep.subr.mxu0 0.0
  %67 = vmatpush1.msra.mxu0 %v22
  %68 = vmatprep.subr.mxu0 0.0
  %69 = vmatpush1.msra.mxu0 %v21
  %70 = vmatprep.subr.mxu0 0.0
  %71 = vmatpush1.msra.mxu0 %v20
  %72 = vmatprep.subr.mxu0 0.0
  %73 = vmatpush1.msra.mxu0 %v19
  %74 = vmatprep.subr.mxu0 0.0
  %75 = vmatpush1.msra.mxu0 %v18
  %76 = vmatprep.subr.mxu0 0.0
  %77 = vmatpush1.msra.mxu0 %v17
  %78 = vmatprep.subr.mxu0 0.0
  %79 = vmatpush1.msra.mxu0 %v16
  %80 = vmatprep.subr.mxu0 0.0
  %81 = vmatpush2.msra.mxu0 %v47
  %82 = vmatprep.subr.mxu0 0.0
  %83 = vmatpush2.msra.mxu0 %v46
  %84 = vmatprep.subr.mxu0 0.0
  %85 = vmatpush2.msra.mxu0 %v45
  %86 = vmatprep.subr.mxu0 0.0
  %87 = vmatpush2.msra.mxu0 %v44
  %88 = vmatprep.subr.mxu0 0.0
  %89 = vmatpush2.msra.mxu0 %v43
  %90 = vmatprep.subr.mxu0 0.0
  %91 = vmatpush2.msra.mxu0 %v42
  %92 = vmatprep.subr.mxu0 0.0
  %93 = vmatpush2.msra.mxu0 %v41
  %94 = vmatprep.subr.mxu0 0.0
  %95 = vmatpush2.msra.mxu0 %v40
  %96 = vmatprep.subr.mxu0 0.0
  %97 = vmatpush2.msra.mxu0 %v39
  %98 = vmatprep.subr.mxu0 0.0
  %99 = vmatpush2.msra.mxu0 %v38
  %100 = vmatprep.subr.mxu0 0.0
  %101 = vmatpush2.msra.mxu0 %v37
  %102 = vmatprep.subr.mxu0 0.0
  %103 = vmatpush2.msra.mxu0 %v36
  %104 = vmatprep.subr.mxu0 0.0
  %105 = vmatpush2.msra.mxu0 %v35
  %106 = vmatprep.subr.mxu0 0.0
  %107 = vmatpush2.msra.mxu0 %v34
  %108 = vmatprep.subr.mxu0 0.0
  %109 = vmatpush2.msra.mxu0 %v33
  %110 = vmatprep.subr.mxu0 0.0
  %111 = vmatpush2.msra.mxu0 %v32
  %112 = vmatprep.mubr.f32.mxu0 %v14
  %113 = vmatmul.mubr.f32.gmra.mxu0 %v15
  %v114 = vpop.f32.mrf.mxu0
  %v115 = vadd.f32 0.0, %v114
  %v116 = vpop.f32.mrf.mxu0
  %117 = vdwg.mxu0
  %v118 = vsub.f32 0.0, %v115
  %v119 = vmul.f32 %v118, 1.442695
  %v120 = vpow.pop %v119
  %v121 = vld [vmem:[%s2] sm:$0xff]
  %v122 = vld [vmem:[%s2 + $0x8] sm:$0xff]
  %v123 = vld [vmem:[%s2 + $0x10] sm:$0xff]
  %v124 = vld [vmem:[%s2 + $0x18] sm:$0xff]
  %v125 = vld [vmem:[%s2 + $0x20] sm:$0xff]
  %v126 = vld [vmem:[%s2 + $0x28] sm:$0xff]
  %v127 = vld [vmem:[%s2 + $0x30] sm:$0xff]
  %v128 = vld [vmem:[%s2 + $0x38] sm:$0xff]
  %v129 = vld [vmem:[%s2 + $0x40] sm:$0xff]
  %v130 = vld [vmem:[%s2 + $0x48] sm:$0xff]
  %v131 = vld [vmem:[%s2 + $0x50] sm:$0xff]
  %v132 = vld [vmem:[%s2 + $0x58] sm:$0xff]
  %v133 = vld [vmem:[%s2 + $0x60] sm:$0xff]
  %v134 = vld [vmem:[%s2 + $0x68] sm:$0xff]
  %v135 = vld [vmem:[%s2 + $0x70] sm:$0xff]
  %v136 = vld [vmem:[%s2 + $0x78] sm:$0xff]
  %137 = vmatprep.subr.mxu0 0.0
  %138 = vmatpush1.msra.mxu0 %v136
  %139 = vmatprep.subr.mxu0 0.0
  %140 = vmatpush1.msra.mxu0 %v135
  %141 = vmatprep.subr.mxu0 0.0
  %142 = vmatpush1.msra.mxu0 %v134
  %143 = vmatprep.subr.mxu0 0.0
  %144 = vmatpush1.msra.mxu0 %v133
  %145 = vmatprep.subr.mxu0 0.0
  %146 = vmatpush1.msra.mxu0 %v132
  %147 = vmatprep.subr.mxu0 0.0
  %148 = vmatpush1.msra.mxu0 %v131
  %149 = vmatprep.subr.mxu0 0.0
  %150 = vmatpush1.msra.mxu0 %v130
  %151 = vmatprep.subr.mxu0 0.0
  %152 = vmatpush1.msra.mxu0 %v129
  %153 = vmatprep.subr.mxu0 0.0
  %154 = vmatpush1.msra.mxu0 %v128
  %155 = vmatprep.subr.mxu0 0.0
  %156 = vmatpush1.msra.mxu0 %v127
  %157 = vmatprep.subr.mxu0 0.0
  %158 = vmatpush1.msra.mxu0 %v126
  %159 = vmatprep.subr.mxu0 0.0
  %160 = vmatpush1.msra.mxu0 %v125
  %161 = vmatprep.subr.mxu0 0.0
  %162 = vmatpush1.msra.mxu0 %v124
  %163 = vmatprep.subr.mxu0 0.0
  %164 = vmatpush1.msra.mxu0 %v123
  %165 = vmatprep.subr.mxu0 0.0
  %166 = vmatpush1.msra.mxu0 %v122
  %167 = vmatprep.subr.mxu0 0.0
  %168 = vmatpush1.msra.mxu0 %v121
  %169 = vmatprep.subr.mxu0 0.0
  %170 = vmatpush2.msra.mxu0 0.0
  %171 = vmatprep.subr.mxu0 0.0
  %172 = vmatpush2.msra.mxu0 0.0
  %173 = vmatprep.subr.mxu0 0.0
  %174 = vmatpush2.msra.mxu0 0.0
  %175 = vmatprep.subr.mxu0 0.0
  %176 = vmatpush2.msra.mxu0 0.0
  %177 = vmatprep.subr.mxu0 0.0
  %178 = vmatpush2.msra.mxu0 0.0
  %179 = vmatprep.subr.mxu0 0.0
  %180 = vmatpush2.msra.mxu0 0.0
  %181 = vmatprep.subr.mxu0 0.0
  %182 = vmatpush2.msra.mxu0 0.0
  %183 = vmatprep.subr.mxu0 0.0
  %184 = vmatpush2.msra.mxu0 0.0
  %185 = vmatprep.subr.mxu0 0.0
  %186 = vmatpush2.msra.mxu0 0.0
  %187 = vmatprep.subr.mxu0 0.0
  %188 = vmatpush2.msra.mxu0 0.0
  %189 = vmatprep.subr.mxu0 0.0
  %190 = vmatpush2.msra.mxu0 0.0
  %191 = vmatprep.subr.mxu0 0.0
  %192 = vmatpush2.msra.mxu0 0.0
  %193 = vmatprep.subr.mxu0 0.0
  %194 = vmatpush2.msra.mxu0 0.0
  %195 = vmatprep.subr.mxu0 0.0
  %196 = vmatpush2.msra.mxu0 0.0
  %197 = vmatprep.subr.mxu0 0.0
  %198 = vmatpush2.msra.mxu0 0.0
  %199 = vmatprep.subr.mxu0 0.0
  %200 = vmatpush2.msra.mxu0 0.0
  %201 = vmatprep.mubr.f32.mxu0 0.0
  %202 = vmatmul.mubr.f32.gmra.mxu0 %v120
  %v203 = vpop.f32.mrf.mxu0
  %v204 = vadd.f32 0.0, %v203
  %v205 = vpop.f32.mrf.mxu0
  %206 = vdwg.mxu0
  %207 = vst [vmem:[%s3] sm:$0xff] %v204
  // Predicated region
  $region14: #{partition_expectation.3} parent=0 // pred_check
    _
  $region15: #{partition_expectation.3} parent=0 // pred_check_branch
    %209 = sbr.rel (0) target = $region17
  $region16: #{partition_expectation.3} parent=0 // pred_region
    _
  $region17: #{partition_expectation.3} parent=0 // pred_fallthru
    _
  // Predicated region
  $region18: #{partition_expectation.3} parent=0 // pred_check
    _
  $region19: #{partition_expectation.3} parent=0 // pred_check_branch
    %211 = sbr.rel (0) target = $region21
  $region20: #{partition_expectation.3} parent=0 // pred_region
    _
  $region21: #{partition_expectation.3} parent=0 // pred_fallthru
    _

// kernel: partition_expectation.2
$region0: #{partition_expectation.2}
  #allocation0 [shape = 'u32[]', space=smem, size = 0x4, offset = 0x4, fixed_abs, tag = 'smem constant byte address 0x4 - core index']
  #allocation1 [shape = 'u32[144,128]{1,0:T(1,128)}', space=vmem, size = 0x12000, scoped, tag = 'internal scratch']
  %s0 = inlined_call_operand.vmem [shape: f32[8,128], index: 0, kind: input, shape index: {}]
  %s1 = inlined_call_operand.vmem [shape: f32[256,128], index: 1, kind: input, shape index: {}]
  %s2 = inlined_call_operand.vmem [shape: f32[1,8,128], index: 2, kind: output, shape index: {}]
  %s3 = sld [smem:[#allocation0]]
  $region18: #{partition_expectation.2} parent=0
    _
  %s5 = ssub.s32 1, %s3
  %s6 = scalar_select 0, %s5, %s3
  // Predicated region
  $region2: #{partition_expectation.2} parent=0 // pred_check
    _
  $region3: #{partition_expectation.2} parent=0 // pred_check_branch
    %8 = sbr.rel (0) target = $region5
  $region4: #{partition_expectation.2} parent=0 // pred_region
    _
  $region5: #{partition_expectation.2} parent=0 // pred_fallthru
    _
  // Predicated region
  $region6: #{partition_expectation.2} parent=0 // pred_check
    _
  $region7: #{partition_expectation.2} parent=0 // pred_check_branch
    %10 = sbr.rel (0) target = $region9
  $region8: #{partition_expectation.2} parent=0 // pred_region
    _
  $region9: #{partition_expectation.2} parent=0 // pred_fallthru
    _
  %v11 = vld [vmem:[%s0] sm:$0xff]
  %v12 = vmul.f32 %v11, %v11
  %v13 = vld [vmem:[%s1] sm:$0xff]
  %v14 = vld [vmem:[%s1 + $0x8] sm:$0xff]
  %v15 = vld [vmem:[%s1 + $0x10] sm:$0xff]
  %v16 = vld [vmem:[%s1 + $0x18] sm:$0xff]
  %v17 = vld [vmem:[%s1 + $0x20] sm:$0xff]
  %v18 = vld [vmem:[%s1 + $0x28] sm:$0xff]
  %v19 = vld [vmem:[%s1 + $0x30] sm:$0xff]
  %v20 = vld [vmem:[%s1 + $0x38] sm:$0xff]
  %v21 = vld [vmem:[%s1 + $0x40] sm:$0xff]
  %v22 = vld [vmem:[%s1 + $0x48] sm:$0xff]
  %v23 = vld [vmem:[%s1 + $0x50] sm:$0xff]
  %v24 = vld [vmem:[%s1 + $0x58] sm:$0xff]
  %v25 = vld [vmem:[%s1 + $0x60] sm:$0xff]
  %v26 = vld [vmem:[%s1 + $0x68] sm:$0xff]
  %v27 = vld [vmem:[%s1 + $0x70] sm:$0xff]
  %v28 = vld [vmem:[%s1 + $0x78] sm:$0xff]
  %v29 = vld [vmem:[%s1 + $0x80] sm:$0xff]
  %v30 = vld [vmem:[%s1 + $0x88] sm:$0xff]
  %v31 = vld [vmem:[%s1 + $0x90] sm:$0xff]
  %v32 = vld [vmem:[%s1 + $0x98] sm:$0xff]
  %v33 = vld [vmem:[%s1 + $0xa0] sm:$0xff]
  %v34 = vld [vmem:[%s1 + $0xa8] sm:$0xff]
  %v35 = vld [vmem:[%s1 + $0xb0] sm:$0xff]
  %v36 = vld [vmem:[%s1 + $0xb8] sm:$0xff]
  %v37 = vld [vmem:[%s1 + $0xc0] sm:$0xff]
  %v38 = vld [vmem:[%s1 + $0xc8] sm:$0xff]
  %v39 = vld [vmem:[%s1 + $0xd0] sm:$0xff]
  %v40 = vld [vmem:[%s1 + $0xd8] sm:$0xff]
  %v41 = vld [vmem:[%s1 + $0xe0] sm:$0xff]
  %v42 = vld [vmem:[%s1 + $0xe8] sm:$0xff]
  %v43 = vld [vmem:[%s1 + $0xf0] sm:$0xff]
  %v44 = vld [vmem:[%s1 + $0xf8] sm:$0xff]
  %45 = vmatprep.subr.mxu0 0.0
  %46 = vmatpush1.msra.mxu0 %v28
  %47 = vmatprep.subr.mxu0 0.0
  %48 = vmatpush1.msra.mxu0 %v27
  %49 = vmatprep.subr.mxu0 0.0
  %50 = vmatpush1.msra.mxu0 %v26
  %51 = vmatprep.subr.mxu0 0.0
  %52 = vmatpush1.msra.mxu0 %v25
  %53 = vmatprep.subr.mxu0 0.0
  %54 = vmatpush1.msra.mxu0 %v24
  %55 = vmatprep.subr.mxu0 0.0
  %56 = vmatpush1.msra.mxu0 %v23
  %57 = vmatprep.subr.mxu0 0.0
  %58 = vmatpush1.msra.mxu0 %v22
  %59 = vmatprep.subr.mxu0 0.0
  %60 = vmatpush1.msra.mxu0 %v21
  %61 = vmatprep.subr.mxu0 0.0
  %62 = vmatpush1.msra.mxu0 %v20
  %63 = vmatprep.subr.mxu0 0.0
  %64 = vmatpush1.msra.mxu0 %v19
  %65 = vmatprep.subr.mxu0 0.0
  %66 = vmatpush1.msra.mxu0 %v18
  %67 = vmatprep.subr.mxu0 0.0
  %68 = vmatpush1.msra.mxu0 %v17
  %69 = vmatprep.subr.mxu0 0.0
  %70 = vmatpush1.msra.mxu0 %v16
  %71 = vmatprep.subr.mxu0 0.0
  %72 = vmatpush1.msra.mxu0 %v15
  %73 = vmatprep.subr.mxu0 0.0
  %74 = vmatpush1.msra.mxu0 %v14
  %75 = vmatprep.subr.mxu0 0.0
  %76 = vmatpush1.msra.mxu0 %v13
  %77 = vmatprep.subr.mxu0 0.0
  %78 = vmatpush2.msra.mxu0 %v44
  %79 = vmatprep.subr.mxu0 0.0
  %80 = vmatpush2.msra.mxu0 %v43
  %81 = vmatprep.subr.mxu0 0.0
  %82 = vmatpush2.msra.mxu0 %v42
  %83 = vmatprep.subr.mxu0 0.0
  %84 = vmatpush2.msra.mxu0 %v41
  %85 = vmatprep.subr.mxu0 0.0
  %86 = vmatpush2.msra.mxu0 %v40
  %87 = vmatprep.subr.mxu0 0.0
  %88 = vmatpush2.msra.mxu0 %v39
  %89 = vmatprep.subr.mxu0 0.0
  %90 = vmatpush2.msra.mxu0 %v38
  %91 = vmatprep.subr.mxu0 0.0
  %92 = vmatpush2.msra.mxu0 %v37
  %93 = vmatprep.subr.mxu0 0.0
  %94 = vmatpush2.msra.mxu0 %v36
  %95 = vmatprep.subr.mxu0 0.0
  %96 = vmatpush2.msra.mxu0 %v35
  %97 = vmatprep.subr.mxu0 0.0
  %98 = vmatpush2.msra.mxu0 %v34
  %99 = vmatprep.subr.mxu0 0.0
  %100 = vmatpush2.msra.mxu0 %v33
  %101 = vmatprep.subr.mxu0 0.0
  %102 = vmatpush2.msra.mxu0 %v32
  %103 = vmatprep.subr.mxu0 0.0
  %104 = vmatpush2.msra.mxu0 %v31
  %105 = vmatprep.subr.mxu0 0.0
  %106 = vmatpush2.msra.mxu0 %v30
  %107 = vmatprep.subr.mxu0 0.0
  %108 = vmatpush2.msra.mxu0 %v29
  %109 = vmatprep.mubr.f32.mxu0 %v11
  %110 = vmatmul.mubr.f32.gmra.mxu0 %v12
  %v111 = vpop.f32.mrf.mxu0
  %v112 = vadd.f32 0.0, %v111
  %v113 = vpop.f32.mrf.mxu0
  %114 = vdwg.mxu0
  %v115 = vsub.f32 0.0, %v112
  %v116 = vmul.f32 %v115, 1.442695
  %v117 = vpow.pop %v116
  %v118 = vrot.slane %v117, 4
  %v119 = vadd.f32 %v117, %v118
  %v120 = vrot.slane %v119, 2
  %v121 = vadd.f32 %v119, %v120
  %v122 = vrot.slane %v121, 1
  %v123 = vadd.f32 %v121, %v122
  %124 = vst [vmem:[%s2] sm:$0xff] %v123
  // Predicated region
  $region10: #{partition_expectation.2} parent=0 // pred_check
    _
  $region11: #{partition_expectation.2} parent=0 // pred_check_branch
    %126 = sbr.rel (0) target = $region13
  $region12: #{partition_expectation.2} parent=0 // pred_region
    _
  $region13: #{partition_expectation.2} parent=0 // pred_fallthru
    _
  // Predicated region
  $region14: #{partition_expectation.2} parent=0 // pred_check
    _
  $region15: #{partition_expectation.2} parent=0 // pred_check_branch
    %128 = sbr.rel (0) target = $region17
  $region16: #{partition_expectation.2} parent=0 // pred_region
    _
  $region17: #{partition_expectation.2} parent=0 // pred_fallthru
    _

</llo_original>
